<compile_context>
chip_gen: v7x
topology: tpu7x:2x2x1
jax: 0.10.0
libtpu: 0.0.40
codegen_flags: <defaults>
</compile_context>

<pallas_src>
import functools

import numpy as np
import jax
import jax.numpy as jnp
from jax.experimental import pallas as pl
from jax.experimental.pallas import tpu as pltpu


def _banded_avg_matrix(L, kernel_size, stride, pad):
    """A[t, j] = (# taps of output window t that hit source row j) / k,
    with replicate padding folded in by clamping tap indices to [0, L-1]."""
    Lp = L + 2 * pad
    L_out = (Lp - kernel_size) // stride + 1
    assert L_out >= 1, "kernel_size too large for this sequence length"
    rows = np.repeat(np.arange(L_out), kernel_size)
    src = np.clip(
        np.arange(L_out)[:, None] * stride
        + np.arange(kernel_size)[None, :] - pad,
        0, L - 1).reshape(-1)
    A = np.zeros((L_out, L), np.float32)
    np.add.at(A, (rows, src), np.float32(1.0 / kernel_size))
    return A, L_out


def _moving_avg_kernel(a_ref, x_ref, o_ref, *, bb):
    # a_ref: (L_out, L) f32 (resident), x_ref: (bb, L, Cb), o_ref: (bb, L_out, Cb)
    A = a_ref[...]
    for b in range(bb):                      # bb is small (<= 16), static unroll
        xb = x_ref[b].astype(jnp.float32)
        o_ref[b] = jnp.dot(A, xb, preferred_element_type=jnp.float32
                           ).astype(o_ref.dtype)


def _largest_divisor_leq(n, cap):
    cap = max(1, min(n, cap))
    for d in range(cap, 0, -1):
        if n % d == 0:
            return d
    return 1


def _pick_channel_block(C, L, itemsize, tile_budget=2 << 20):
    """Largest multiple of 128 that divides C and keeps one batch's input tile
    under `tile_budget`; falls back to full C when C is not lane-aligned."""
    if C % 128 != 0:
        return C
    best = 128
    m = 256
    while m <= C:
        if C % m == 0 and L * m * itemsize <= tile_budget:
            best = m
        m += 128
    return best


def moving_avg_forward(x, kernel_size, stride=1):
    """Pallas moving average.  x: (B, L, C) -> (B, L_out, C)."""
    B, L, C = x.shape
    pad = (kernel_size - 1) // 2
    A_np, L_out = _banded_avg_matrix(L, kernel_size, stride, pad)
    A = jnp.asarray(A_np)

    itemsize = jnp.dtype(x.dtype).itemsize

    # --- channel blocking (always a divisor of C -> no dropped channels) ---
    c_blk = _pick_channel_block(C, L, itemsize)
    assert C % c_blk == 0, "channel block must divide C"
    n_cblk = C // c_blk

    # --- batch blocking: amortize the ~0.35us/step overhead on tiny tiles ---
    per_batch_bytes = (L + L_out) * c_blk * itemsize
    bb_cap = max(1, (1 << 20) // max(per_batch_bytes, 1))
    Bb = _largest_divisor_leq(B, min(bb_cap, 16))
    if Bb > 1 and (B // Bb) * n_cblk < 2:
        # keep >= 2 grid steps so both v7x TensorCores are used
        Bb = _largest_divisor_leq(B, Bb // 2)
    n_bblk = B // Bb
    if n_bblk * n_cblk < 2 and n_cblk == 1 and c_blk % 256 == 0:
        c_blk //= 2                          # still a multiple of 128 dividing C
        n_cblk = C // c_blk

    # --- generation-aware VMEM budget ---
    a_bytes = int(A.size) * 4
    in_tile = Bb * L * c_blk * itemsize
    out_tile = Bb * L_out * c_blk * itemsize
    est = 2 * (a_bytes + in_tile + out_tile) + 4 * c_blk * (L + L_out)
    try:
        info = pltpu.get_tpu_info()
        phys = getattr(info, "vmem_capacity_bytes", None) or (64 << 20)
    except Exception:
        phys = 64 << 20                       # conservative (v7x physical VMEM)
    cap = (3 * phys) // 4                     # leave headroom for compiler scratch
    vmem_limit = int(min(cap, max(16 << 20, 2 * est)))

    kern = functools.partial(_moving_avg_kernel, bb=Bb)
    return pl.pallas_call(
        kern,
        out_shape=jax.ShapeDtypeStruct((B, L_out, C), x.dtype),
        grid_spec=pltpu.PrefetchScalarGridSpec(
            num_scalar_prefetch=0,
            grid=(n_bblk, n_cblk),
            in_specs=[
                # averaging matrix: constant block -> stays resident in VMEM
                pl.BlockSpec((L_out, L), lambda b, c: (0, 0)),
                pl.BlockSpec((Bb, L, c_blk), lambda b, c: (b, 0, c)),
            ],
            out_specs=pl.BlockSpec((Bb, L_out, c_blk), lambda b, c: (b, 0, c)),
        ),
        compiler_params=pltpu.CompilerParams(
            dimension_semantics=("parallel", "parallel"),
            vmem_limit_bytes=vmem_limit,
        ),
    )(A, x)


def _reference(x, kernel_size, stride):
    """Pure-JAX reference identical to the PyTorch module."""
    pad = (kernel_size - 1) // 2
    front = jnp.repeat(x[:, :1, :], pad, axis=1)
    end = jnp.repeat(x[:, -1:, :], pad, axis=1)
    xp = jnp.concatenate([front, x, end], axis=1)
    Lp = xp.shape[1]
    L_out = (Lp - kernel_size) // stride + 1
    return jnp.stack(
        [xp[:, t * stride:t * stride + kernel_size, :].mean(axis=1)
         for t in range(L_out)], axis=1)


if __name__ == "__main__":
    root = jax.random.PRNGKey(0)
    k1, k2 = jax.random.split(root)

    # Case 1: small module-scale shapes, stride 1 (non-lane-aligned channels).
    x1 = jax.random.normal(k1, (2, 32, 8), dtype=jnp.float32)
    y1 = jax.block_until_ready(moving_avg_forward(x1, kernel_size=5, stride=1))
    r1 = _reference(x1, 5, 1)
    assert y1.shape == r1.shape == (2, 32, 8)
    assert jnp.allclose(y1, r1, atol=1e-4, rtol=1e-4)

    # Case 2: lane-aligned channels + stride 2 (exercises the strided band).
    x2 = jax.random.normal(k2, (2, 48, 256), dtype=jnp.float32)
    y2 = jax.block_until_ready(moving_avg_forward(x2, kernel_size=7, stride=2))
    r2 = _reference(x2, 7, 2)
    assert y2.shape == r2.shape == (2, 24, 256)
    assert jnp.allclose(y2, r2, atol=1e-4, rtol=1e-4)

    print("KERNEL_OK")
</pallas_src>

<mosaic_0001>
module attributes {stable_mosaic.version = 11 : i64} {
  func.func @_moving_avg_kernel(%arg0: i32, %arg1: i32, %arg2: memref<32x32xf32, #tpu.memory_space<vmem>>, %arg3: memref<1x32x8xf32, #tpu.memory_space<vmem>>, %arg4: memref<1x32x8xf32, #tpu.memory_space<vmem>>) attributes {dimension_semantics = [#tpu.dimension_semantics<parallel>, #tpu.dimension_semantics<parallel>], iteration_bounds = array<i64: 2, 1>, scalar_prefetch = 0 : i64, scratch_operands = 0 : i64, tpu.core_type = #tpu.core_type<tc>, window_params = [{pipeline_mode = #tpu.pipeline_mode<synchronous>, transform_indices = @transform_0, window_bounds = array<i64: 32, 32>}, {transform_indices = @transform_1, window_bounds = array<i64: 1, 32, 8>}, {transform_indices = @transform_2, window_bounds = array<i64: 1, 32, 8>}]} {
    %c0 = arith.constant 0 : index
    %c0_0 = arith.constant 0 : index
    %0 = vector.load %arg2[%c0, %c0_0] : memref<32x32xf32, #tpu.memory_space<vmem>>, vector<32x32xf32>
    %c0_1 = arith.constant 0 : index
    %c0_2 = arith.constant 0 : index
    %c0_3 = arith.constant 0 : index
    %1 = vector.load %arg3[%c0_1, %c0_2, %c0_3] : memref<1x32x8xf32, #tpu.memory_space<vmem>>, vector<1x32x8xf32>
    %2 = vector.shape_cast %1 : vector<1x32x8xf32> to vector<32x8xf32>
    %cst = arith.constant dense<0.000000e+00> : vector<32x8xf32>
    %3 = tpu.matmul %0, %2, %cst {dimension_numbers = #tpu.dot_dimension_numbers<[1], [0], [0], [1], [0, 0, 1, 1], [], []>} : vector<32x32xf32>, vector<32x8xf32>, vector<32x8xf32> -> vector<32x8xf32>
    %c0_4 = arith.constant 0 : index
    %c0_5 = arith.constant 0 : index
    %c0_6 = arith.constant 0 : index
    %4 = vector.load %arg4[%c0_4, %c0_5, %c0_6] : memref<1x32x8xf32, #tpu.memory_space<vmem>>, vector<1x32x8xf32>
    %5 = vector.shape_cast %4 : vector<1x32x8xf32> to vector<32x8xf32>
    %6 = vector.shape_cast %3 : vector<32x8xf32> to vector<1x32x8xf32>
    tpu.vector_store %arg4[%c0_4, %c0_5, %c0_6], %6 {strides = array<i32>} : memref<1x32x8xf32, #tpu.memory_space<vmem>>, vector<1x32x8xf32>,
    return
  }
  func.func @transform_0(%arg0: i32, %arg1: i32) -> (i32, i32) {
    %c0_i32 = arith.constant 0 : i32
    %c0_i32_0 = arith.constant 0 : i32
    %c0_i32_1 = arith.constant 0 : i32
    return %c0_i32, %c0_i32_0 : i32, i32
  }
  func.func @transform_1(%arg0: i32, %arg1: i32) -> (i32, i32, i32) {
    %c0_i32 = arith.constant 0 : i32
    %c0_i32_0 = arith.constant 0 : i32
    return %arg0, %c0_i32, %arg1 : i32, i32, i32
  }
  func.func @transform_2(%arg0: i32, %arg1: i32) -> (i32, i32, i32) {
    %c0_i32 = arith.constant 0 : i32
    %c0_i32_0 = arith.constant 0 : i32
    return %arg0, %c0_i32, %arg1 : i32, i32, i32
  }
}

</mosaic_0001>

<llo_original>
// kernel: tpu_custom_call.1
$region0: #{tpu_custom_call.1}
  #allocation0 [shape = 'u32[]', space=smem, size = 0x4, offset = 0x4, fixed_abs, tag = 'smem constant byte address 0x4 - core index']
  #allocation1 [shape = 'u32[144,128]{1,0:T(1,128)}', space=vmem, size = 0x12000, scoped, tag = 'internal scratch']
  %s0 = inlined_call_operand.vmem [shape: f32[32,32], index: 0, kind: input, shape index: {}]
  %s1 = inlined_call_operand.vmem [shape: f32[2,32,8], index: 1, kind: input, shape index: {}]
  %s2 = inlined_call_operand.vmem [shape: f32[2,32,8], index: 2, kind: output, shape index: {}]
  %s3 = sld [smem:[#allocation0]]
  $region41: #{tpu_custom_call.1} parent=0
    _
  %s5 = ssub.s32 1, %s3
  %s6 = scalar_select 0, %s5, %s3
  loop: start=0, step=1, limit=4
  $region2: #{tpu_custom_call.1} parent=0 // loop_pre_header
    _
  $region3: #{tpu_custom_call.1} parent=0 // loop_header
    %s8 = sphi 0, %s12
    %p9 = scmp.ge.s32.totalorder %s8, 4
    %s15 = sphi 0, %s27
    %s16 = sphi 0, %s23
    %s17 = sphi 0, %s15
    %s18 = sphi 0, %s16
    %s19 = sphi 0, %s17
    %s20 = sphi 0, %s18
    %s28 = sphi 0, %s28
    %s30 = sphi 0, %s28
    %s31 = sphi 0, %s30
    %s45 = sphi 0, %s31
    %s53 = sphi 0, %s55
    %s56 = sphi 0, %s53
    %s57 = sphi 0, %s56
    %s73 = sphi 0, %s57
    %s81 = sphi 0, %s83
    %s84 = sphi 0, %s81
    %s85 = sphi 0, %s84
    %s101 = sphi 0, %s85
  $region4: #{tpu_custom_call.1} parent=0 // loop_header_branch
    %11 = sbr.rel (%p9) target = $region8
  $region5: #{tpu_custom_call.1} parent=0 // loop_body
    %s13 = ssub.s32 %s8, 1
    %s14 = ssub.s32 %s8, 2
    %s21 = sadd.s32 1, %s16
    %p22 = scmp.ge.s32.totalorder %s21, 1
    %s23 = scalar_select %p22, 0, %s21
    %s24 = sadd.s32 1, %s15
    %s25 = scalar_select %p22, %s24, %s15
    %p26 = scmp.ge.s32.totalorder %s25, 2
    %s27 = scalar_select %p26, 0, %s25
    %s29 = sadd.s32 %s28, 1
    %p32 = scmp.eq.s32.totalorder %s8, 1
    %p33 = scmp.ne.s32.totalorder %s28, %s30
    %p34 = scmp.eq.s32.totalorder %s8, 0
    %p35 = por %p33, %p34
    %p36 = scmp.ne.s32.totalorder %s28, %s30
    %p37 = scmp.eq.s32.totalorder %s13, 1
    %p38 = por %p36, %p37
    %p39 = scmp.ne.s32.totalorder %s30, %s31
    %p40 = scmp.eq.s32.totalorder %s13, 0
    %p41 = por %p39, %p40
    %p42 = scmp.ne.s32.totalorder %s30, %s31
    %p43 = scmp.eq.s32.totalorder %s14, 1
    %p44 = por %p42, %p43
    %p46 = scmp.ne.s32.totalorder %s31, %s45
    %p47 = scmp.eq.s32.totalorder %s14, 0
    %p48 = por %p46, %p47
    %s49 = ssub.s32 %s15, %s27
    %s50 = ssub.s32 %s16, %s23
    %s51 = sor.u32 %s49, %s50
    %p52 = scmp.eq.s32.totalorder %s51, 0
    %s54 = sadd.s32 %s53, 1
    %s55 = scalar_select %p52, %s53, %s54
    %p58 = pneg %p52
    %p59 = scmp.eq.s32.totalorder %s8, 1
    %p60 = por %p58, %p59
    %p61 = scmp.ne.s32.totalorder %s53, %s56
    %p62 = scmp.eq.s32.totalorder %s8, 0
    %p63 = por %p61, %p62
    %p64 = scmp.ne.s32.totalorder %s53, %s56
    %p65 = scmp.eq.s32.totalorder %s13, 1
    %p66 = por %p64, %p65
    %p67 = scmp.ne.s32.totalorder %s56, %s57
    %p68 = scmp.eq.s32.totalorder %s13, 0
    %p69 = por %p67, %p68
    %p70 = scmp.ne.s32.totalorder %s56, %s57
    %p71 = scmp.eq.s32.totalorder %s14, 1
    %p72 = por %p70, %p71
    %p74 = scmp.ne.s32.totalorder %s57, %s73
    %p75 = scmp.eq.s32.totalorder %s14, 0
    %p76 = por %p74, %p75
    %s77 = ssub.s32 %s15, %s27
    %s78 = ssub.s32 %s16, %s23
    %s79 = sor.u32 %s77, %s78
    %p80 = scmp.eq.s32.totalorder %s79, 0
    %s82 = sadd.s32 %s81, 1
    %s83 = scalar_select %p80, %s81, %s82
    %p86 = pneg %p80
    %p87 = scmp.eq.s32.totalorder %s8, 1
    %p88 = por %p86, %p87
    %p89 = scmp.ne.s32.totalorder %s81, %s84
    %p90 = scmp.eq.s32.totalorder %s8, 0
    %p91 = por %p89, %p90
    %p92 = scmp.ne.s32.totalorder %s81, %s84
    %p93 = scmp.eq.s32.totalorder %s13, 1
    %p94 = por %p92, %p93
    %p95 = scmp.ne.s32.totalorder %s84, %s85
    %p96 = scmp.eq.s32.totalorder %s13, 0
    %p97 = por %p95, %p96
    %p98 = scmp.ne.s32.totalorder %s84, %s85
    %p99 = scmp.eq.s32.totalorder %s14, 1
    %p100 = por %p98, %p99
    %p102 = scmp.ne.s32.totalorder %s85, %s101
    %p103 = scmp.eq.s32.totalorder %s14, 0
    %p104 = por %p102, %p103
    %p105 = scmp.le.s32.totalorder 1, %s8
    %p106 = scmp.lt.s32.totalorder %s8, 3
    %p107 = pnand %p105, %p106
    %p108 = pneg %p107
    // Predicated region
    $region9: #{tpu_custom_call.1} parent=5 // pred_check
      _
    $region10: #{tpu_custom_call.1} parent=5 // pred_check_branch
      %110 = sbr.rel (%p107) target = $region12
    $region11: #{tpu_custom_call.1} parent=5 // pred_region
      %s111 = ssub.s32 %s8, 1
      // Predicated region
      $region13: #{tpu_custom_call.1} parent=11 // pred_check
        %p112 = pneg %p41
      $region14: #{tpu_custom_call.1} parent=11 // pred_check_branch
        %114 = sbr.rel (%p112) target = $region16
      $region15: #{tpu_custom_call.1} parent=11 // pred_region
        _
      $region16: #{tpu_custom_call.1} parent=11 // pred_fallthru
        _
    $region12: #{tpu_custom_call.1} parent=5 // pred_fallthru
      _
    %p115 = scmp.lt.s32.totalorder %s8, 2
    // Predicated region
    $region17: #{tpu_custom_call.1} parent=5 // pred_check
      %p116 = pneg %p115
    $region18: #{tpu_custom_call.1} parent=5 // pred_check_branch
      %118 = sbr.rel (%p116) target = $region20
    $region19: #{tpu_custom_call.1} parent=5 // pred_region
      // Predicated region
      $region21: #{tpu_custom_call.1} parent=19 // pred_check
        %p119 = pneg %p63
      $region22: #{tpu_custom_call.1} parent=19 // pred_check_branch
        %121 = sbr.rel (%p119) target = $region24
      $region23: #{tpu_custom_call.1} parent=19 // pred_region
        %p122 = scmp.lt.s32.totalorder %s15, 1
        %s123 = scalar_select %p122, %s15, 1
        %p124 = scmp.lt.s32.totalorder %s16, 0
        %s125 = scalar_select %p124, %s16, 0
        %s126 = smul.addr %s123, 4
        %s127 = sadd.s32 %s125, %s126
        %s128 = smul.addr %s127, 8
        %s129 = scalar_lea.vmem %s1, %s128
      $region24: #{tpu_custom_call.1} parent=19 // pred_fallthru
        _
    $region20: #{tpu_custom_call.1} parent=5 // pred_fallthru
      _
    %p130 = scmp.le.s32.totalorder 1, %s8
    %p131 = scmp.lt.s32.totalorder %s8, 3
    %p132 = pnand %p130, %p131
    %p133 = pneg %p132
    // Predicated region
    $region25: #{tpu_custom_call.1} parent=5 // pred_check
      _
    $region26: #{tpu_custom_call.1} parent=5 // pred_check_branch
      %135 = sbr.rel (%p132) target = $region28
    $region27: #{tpu_custom_call.1} parent=5 // pred_region
      %s136 = ssub.s32 %s8, 1
      %p137 = pneg %p41
      %p138 = pneg %p38
      %p139 = scmp.lt.s32.totalorder %s17, 1
      %s140 = scalar_select %p139, %s17, 1
      %p141 = scmp.lt.s32.totalorder %s18, 0
      %s142 = scalar_select %p141, %s18, 0
      %s143 = smul.addr %s140, 4
      %s144 = sadd.s32 %s142, %s143
      %s145 = smul.addr %s144, 8
      %s146 = scalar_lea.vmem %s1, %s145
      %p147 = pneg %p69
      %p148 = pneg %p66
      %p149 = pneg %p97
      %p150 = pneg %p94
      %p151 = scmp.lt.s32.totalorder %s17, 1
      %s152 = scalar_select %p151, %s17, 1
      %p153 = scmp.lt.s32.totalorder %s18, 0
      %s154 = scalar_select %p153, %s18, 0
      %s155 = smul.addr %s152, 4
      %s156 = sadd.s32 %s154, %s155
      %s157 = smul.addr %s156, 8
      %s158 = scalar_lea.vmem %s2, %s157
      %p159 = scmp.lt.s32.totalorder %s17, 1
      %s160 = scalar_select %p159, %s17, 1
      %p161 = scmp.lt.s32.totalorder %s18, 0
      %s162 = scalar_select %p161, %s18, 0
      %s163 = smul.addr %s160, 4
      %s164 = sadd.s32 %s162, %s163
      %s165 = smul.addr %s164, 8
      %s166 = scalar_lea.vmem %s1, %s165
      %p167 = scmp.lt.s32.totalorder %s17, 1
      %s168 = scalar_select %p167, %s17, 1
      %p169 = scmp.lt.s32.totalorder %s18, 0
      %s170 = scalar_select %p169, %s18, 0
      %s171 = smul.addr %s168, 4
      %s172 = sadd.s32 %s170, %s171
      %s173 = smul.addr %s172, 8
      %s174 = scalar_lea.vmem %s2, %s173
      %v175 = vld [vmem:[%s0] sm:$0xff]
      %v176 = vld [vmem:[%s0 + $0x8] sm:$0xff]
      %v177 = vld [vmem:[%s0 + $0x10] sm:$0xff]
      %v178 = vld [vmem:[%s0 + $0x18] sm:$0xff]
      %v179 = vld [vmem:[%s166] sm:$0xff]
      %v180 = vld [vmem:[%s166 + $0x8] sm:$0xff]
      %v181 = vld [vmem:[%s166 + $0x10] sm:$0xff]
      %v182 = vld [vmem:[%s166 + $0x18] sm:$0xff]
      %vm183 = vcmask 261120
      %v185 = vsel %vm183, %v175, 0
      %v188 = vsel %vm183, %v176, 0
      %v191 = vsel %vm183, %v177, 0
      %v194 = vsel %vm183, %v178, 0
      %196 = vmatprep.subr.mxu0 0.0
      %197 = vmatpush1.msra.mxu0 %v179
      %198 = vmatprep.subr.mxu0 0.0
      %199 = vmatpush1.msra.mxu0 %v180
      %200 = vmatprep.subr.mxu0 0.0
      %201 = vmatpush1.msra.mxu0 %v181
      %202 = vmatprep.subr.mxu0 0.0
      %203 = vmatpush1.msra.mxu0 %v182
      %204 = vmatprep.subr.mxu0 0.0
      %205 = vmatpush1.msra.mxu0 0.0
      %206 = vmatprep.subr.mxu0 0.0
      %207 = vmatpush1.msra.mxu0 0.0
      %208 = vmatprep.subr.mxu0 0.0
      %209 = vmatpush1.msra.mxu0 0.0
      %210 = vmatprep.subr.mxu0 0.0
      %211 = vmatpush1.msra.mxu0 0.0
      %212 = vmatprep.subr.mxu0 0.0
      %213 = vmatpush1.msra.mxu0 0.0
      %214 = vmatprep.subr.mxu0 0.0
      %215 = vmatpush1.msra.mxu0 0.0
      %216 = vmatprep.subr.mxu0 0.0
      %217 = vmatpush1.msra.mxu0 0.0
      %218 = vmatprep.subr.mxu0 0.0
      %219 = vmatpush1.msra.mxu0 0.0
      %220 = vmatprep.subr.mxu0 0.0
      %221 = vmatpush1.msra.mxu0 0.0
      %222 = vmatprep.subr.mxu0 0.0
      %223 = vmatpush1.msra.mxu0 0.0
      %224 = vmatprep.subr.mxu0 0.0
      %225 = vmatpush1.msra.mxu0 0.0
      %226 = vmatprep.subr.mxu0 0.0
      %227 = vmatpush1.msra.mxu0 0.0
      %228 = vmatprep.subr.mxu0 0.0
      %229 = vmatpush1.msra.mxu0 0.0
      %230 = vmatprep.subr.mxu0 0.0
      %231 = vmatpush1.msra.mxu0 0.0
      %232 = vmatprep.subr.mxu0 0.0
      %233 = vmatpush1.msra.mxu0 0.0
      %234 = vmatprep.subr.mxu0 0.0
      %235 = vmatpush1.msra.mxu0 0.0
      %236 = vmatprep.subr.mxu0 0.0
      %237 = vmatpush1.msra.mxu0 0.0
      %238 = vmatprep.subr.mxu0 0.0
      %239 = vmatpush1.msra.mxu0 0.0
      %240 = vmatprep.subr.mxu0 0.0
      %241 = vmatpush1.msra.mxu0 0.0
      %242 = vmatprep.subr.mxu0 0.0
      %243 = vmatpush1.msra.mxu0 0.0
      %244 = vmatprep.subr.mxu0 0.0
      %245 = vmatpush1.msra.mxu0 0.0
      %246 = vmatprep.subr.mxu0 0.0
      %247 = vmatpush1.msra.mxu0 0.0
      %248 = vmatprep.subr.mxu0 0.0
      %249 = vmatpush1.msra.mxu0 0.0
      %250 = vmatprep.subr.mxu0 0.0
      %251 = vmatpush1.msra.mxu0 0.0
      %252 = vmatprep.subr.mxu0 0.0
      %253 = vmatpush1.msra.mxu0 0.0
      %254 = vmatprep.subr.mxu0 0.0
      %255 = vmatpush1.msra.mxu0 0.0
      %256 = vmatprep.subr.mxu0 0.0
      %257 = vmatpush1.msra.mxu0 0.0
      %258 = vmatprep.subr.mxu0 0.0
      %259 = vmatpush1.msra.mxu0 0.0
      %260 = vmatprep.mubr.f32.mxu0 0.0
      %261 = vmatmul.mubr.f32.gmra.mrb[0].mxu0 %v185
      %v262 = vpop.f32.mrb[0].mxu0
      %v263 = vadd.f32 0.0, %v262
      %v264 = vpop.f32.mrb[0].mxu0
      %265 = vmatprep.mubr.f32.mxu0 0.0
      %266 = vmatmul.mubr.f32.gmra.mrb[0].mxu0 %v188
      %v267 = vpop.f32.mrb[0].mxu0
      %v268 = vadd.f32 0.0, %v267
      %v269 = vpop.f32.mrb[0].mxu0
      %270 = vmatprep.mubr.f32.mxu0 0.0
      %271 = vmatmul.mubr.f32.gmra.mrb[0].mxu0 %v191
      %v272 = vpop.f32.mrb[0].mxu0
      %v273 = vadd.f32 0.0, %v272
      %v274 = vpop.f32.mrb[0].mxu0
      %275 = vmatprep.mubr.f32.mxu0 0.0
      %276 = vmatmul.mubr.f32.gmra.mrb[0].mxu0 %v194
      %v277 = vpop.f32.mrb[0].mxu0
      %v278 = vadd.f32 0.0, %v277
      %v279 = vpop.f32.mrb[0].mxu0
      %280 = vdwg.mxu0
      %vm281 = vcmask 64512
      %282 = vst.msk [vmem:[%s174] sm:$0xff] %vm281, %v263
      %283 = vst.msk [vmem:[%s174 + $0x8] sm:$0xff] %vm281, %v268
      %284 = vst.msk [vmem:[%s174 + $0x10] sm:$0xff] %vm281, %v273
      %285 = vst.msk [vmem:[%s174 + $0x18] sm:$0xff] %vm281, %v278
      %p286 = scmp.lt.s32.totalorder %s17, 1
      %s287 = scalar_select %p286, %s17, 1
      %p288 = scmp.lt.s32.totalorder %s18, 0
      %s289 = scalar_select %p288, %s18, 0
      %s290 = smul.addr %s287, 4
      %s291 = sadd.s32 %s289, %s290
      %s292 = smul.addr %s291, 8
      %s293 = scalar_lea.vmem %s2, %s292
      // Predicated region
      $region29: #{tpu_custom_call.1} parent=27 // pred_check
        %p294 = pneg %p94
      $region30: #{tpu_custom_call.1} parent=27 // pred_check_branch
        %296 = sbr.rel (%p294) target = $region32
      $region31: #{tpu_custom_call.1} parent=27 // pred_region
        _
      $region32: #{tpu_custom_call.1} parent=27 // pred_fallthru
        _
    $region28: #{tpu_custom_call.1} parent=5 // pred_fallthru
      _
    %p297 = scmp.le.s32.totalorder 2, %s8
    // Predicated region
    $region33: #{tpu_custom_call.1} parent=5 // pred_check
      %p298 = pneg %p297
    $region34: #{tpu_custom_call.1} parent=5 // pred_check_branch
      %300 = sbr.rel (%p298) target = $region36
    $region35: #{tpu_custom_call.1} parent=5 // pred_region
      %s301 = ssub.s32 %s8, 2
      // Predicated region
      $region37: #{tpu_custom_call.1} parent=35 // pred_check
        %p302 = pneg %p100
      $region38: #{tpu_custom_call.1} parent=35 // pred_check_branch
        %304 = sbr.rel (%p302) target = $region40
      $region39: #{tpu_custom_call.1} parent=35 // pred_region
        %p305 = scmp.lt.s32.totalorder %s19, 1
        %s306 = scalar_select %p305, %s19, 1
        %p307 = scmp.lt.s32.totalorder %s20, 0
        %s308 = scalar_select %p307, %s20, 0
        %s309 = smul.addr %s306, 4
        %s310 = sadd.s32 %s308, %s309
        %s311 = smul.addr %s310, 8
        %s312 = scalar_lea.vmem %s2, %s311
      $region40: #{tpu_custom_call.1} parent=35 // pred_fallthru
        _
    $region36: #{tpu_custom_call.1} parent=5 // pred_fallthru
      _
  $region6: #{tpu_custom_call.1} parent=0 // loop_footer
    %s12 = sadd.s32 1, %s8
  $region7: #{tpu_custom_call.1} parent=0 // loop_footer_branch
    %7 = sbr.rel target = $region3
  $region8: #{tpu_custom_call.1} parent=0 // loop_exit
    _

</llo_original>
